<compile_context>
chip_gen: v7x
topology: tpu7x:2x2x1
jax: 0.10.0
libtpu: 0.0.40
codegen_flags: <defaults>
</compile_context>

<pallas_src>
import jax
import jax.numpy as jnp
from jax.experimental import pallas as pl
from jax.experimental.pallas import tpu as pltpu

IN_FEATURES = 80
OUT_FEATURES = 10
BATCH = 1


def linear_kernel(x_ref, w_ref, b_ref, o_ref):
    # x_ref: (TB, IN)   w_ref: (IN, OUT)   b_ref: (1, OUT)   o_ref: (TB, OUT)
    # Scale [1..OUT] is already folded into w_ref / b_ref at init time.
    y = jnp.dot(x_ref[...], w_ref[...], preferred_element_type=jnp.float32)
    o_ref[...] = (y + b_ref[...]).astype(o_ref.dtype)


def _pick_batch_tile(batch: int) -> int:
    # Sublane-aligned batch tiles when the batch is large enough; otherwise a
    # single full-extent block (legal because it equals the array dims).
    for tb in (512, 256, 128, 64, 32, 16, 8):
        if batch % tb == 0:
            return tb
    return batch


def _forward(x, w_scaled, b_scaled):
    batch, in_f = x.shape
    out_f = w_scaled.shape[1]
    tb = _pick_batch_tile(batch)
    grid = (batch // tb,)
    return pl.pallas_call(
        linear_kernel,
        out_shape=jax.ShapeDtypeStruct((batch, out_f), jnp.float32),
        grid_spec=pltpu.PrefetchScalarGridSpec(
            num_scalar_prefetch=0,
            grid=grid,
            in_specs=[
                pl.BlockSpec((tb, in_f), lambda i: (i, 0)),
                pl.BlockSpec((in_f, out_f), lambda i: (0, 0)),
                pl.BlockSpec((1, out_f), lambda i: (0, 0)),
            ],
            out_specs=pl.BlockSpec((tb, out_f), lambda i: (i, 0)),
        ),
        compiler_params=pltpu.CompilerParams(
            dimension_semantics=("parallel",),
        ),
    )(x, w_scaled, b_scaled)


# jit once; shapes are static so the pallas_call is the only per-call work.
model_forward = jax.jit(_forward)


def prepare_params(w, b):
    """One-time parameter prep: transpose, reshape, and fold the constant
    cumsum-of-ones scale [1..OUT] into the weights and bias."""
    out_f = w.shape[0]
    scale = jnp.arange(1, out_f + 1, dtype=jnp.float32)          # cumsum(ones)
    w_scaled = w.T * scale[None, :]                               # (IN, OUT)
    b_scaled = (b * scale).reshape(1, out_f)                      # (1, OUT)
    return w_scaled, b_scaled


if __name__ == "__main__":
    key = jax.random.PRNGKey(0)
    k_x, k_w, k_b = jax.random.split(key, 3)

    # Deterministic parameter init, mimicking torch.nn.Linear(80, 10):
    # uniform(-1/sqrt(fan_in), 1/sqrt(fan_in))
    bound = 1.0 / (IN_FEATURES ** 0.5)
    w = jax.random.uniform(
        k_w, (OUT_FEATURES, IN_FEATURES), jnp.float32, -bound, bound
    )
    b = jax.random.uniform(k_b, (OUT_FEATURES,), jnp.float32, -bound, bound)

    # One-time prep (constant-fold the cumsum scale; hoist transpose/reshape).
    w_scaled, b_scaled = prepare_params(w, b)

    # Input matching the module's expected x = torch.randn(1, 80)
    x = jax.random.normal(k_x, (BATCH, IN_FEATURES), dtype=jnp.float32)

    out = model_forward(x, w_scaled, b_scaled)
    out = jax.block_until_ready(out)

    # Reference check in plain JAX against the *unfolded* formulation.
    scale = jnp.cumsum(jnp.ones((OUT_FEATURES,), jnp.float32)).reshape(1, -1)
    ref = (x @ w.T + b.reshape(1, -1)) * scale
    assert out.shape == (BATCH, OUT_FEATURES)
    assert jnp.allclose(out, ref, atol=1e-4, rtol=1e-5)

    print("KERNEL_OK")
</pallas_src>

<mosaic_0001>
module attributes {stable_mosaic.version = 11 : i64} {
  func.func @linear_kernel(%arg0: i32, %arg1: memref<1x80xf32, #tpu.memory_space<vmem>>, %arg2: memref<80x10xf32, #tpu.memory_space<vmem>>, %arg3: memref<1x10xf32, #tpu.memory_space<vmem>>, %arg4: memref<1x10xf32, #tpu.memory_space<vmem>>) attributes {dimension_semantics = [#tpu.dimension_semantics<parallel>], iteration_bounds = array<i64: 1>, scalar_prefetch = 0 : i64, scratch_operands = 0 : i64, tpu.core_type = #tpu.core_type<tc>, window_params = [{transform_indices = @transform_0, window_bounds = array<i64: 1, 80>}, {pipeline_mode = #tpu.pipeline_mode<synchronous>, transform_indices = @transform_1, window_bounds = array<i64: 80, 10>}, {pipeline_mode = #tpu.pipeline_mode<synchronous>, transform_indices = @transform_2, window_bounds = array<i64: 1, 10>}, {transform_indices = @transform_3, window_bounds = array<i64: 1, 10>}]} {
    %c0 = arith.constant 0 : index
    %c0_0 = arith.constant 0 : index
    %0 = vector.load %arg1[%c0, %c0_0] : memref<1x80xf32, #tpu.memory_space<vmem>>, vector<1x80xf32>
    %c0_1 = arith.constant 0 : index
    %c0_2 = arith.constant 0 : index
    %1 = vector.load %arg2[%c0_1, %c0_2] : memref<80x10xf32, #tpu.memory_space<vmem>>, vector<80x10xf32>
    %cst = arith.constant dense<0.000000e+00> : vector<1x10xf32>
    %2 = tpu.matmul %0, %1, %cst {dimension_numbers = #tpu.dot_dimension_numbers<[1], [0], [0], [1], [0, 0, 1, 1], [], []>} : vector<1x80xf32>, vector<80x10xf32>, vector<1x10xf32> -> vector<1x10xf32>
    %c0_3 = arith.constant 0 : index
    %c0_4 = arith.constant 0 : index
    %3 = vector.load %arg3[%c0_3, %c0_4] : memref<1x10xf32, #tpu.memory_space<vmem>>, vector<1x10xf32>
    %4 = arith.addf %2, %3 : vector<1x10xf32>
    %c0_5 = arith.constant 0 : index
    %c0_6 = arith.constant 0 : index
    %5 = vector.load %arg4[%c0_5, %c0_6] : memref<1x10xf32, #tpu.memory_space<vmem>>, vector<1x10xf32>
    tpu.vector_store %arg4[%c0_5, %c0_6], %4 {strides = array<i32>} : memref<1x10xf32, #tpu.memory_space<vmem>>, vector<1x10xf32>,
    return
  }
  func.func @transform_0(%arg0: i32) -> (i32, i32) {
    %c0_i32 = arith.constant 0 : i32
    %c0_i32_0 = arith.constant 0 : i32
    return %arg0, %c0_i32 : i32, i32
  }
  func.func @transform_1(%arg0: i32) -> (i32, i32) {
    %c0_i32 = arith.constant 0 : i32
    %c0_i32_0 = arith.constant 0 : i32
    %c0_i32_1 = arith.constant 0 : i32
    return %c0_i32, %c0_i32_0 : i32, i32
  }
  func.func @transform_2(%arg0: i32) -> (i32, i32) {
    %c0_i32 = arith.constant 0 : i32
    %c0_i32_0 = arith.constant 0 : i32
    %c0_i32_1 = arith.constant 0 : i32
    return %c0_i32, %c0_i32_0 : i32, i32
  }
  func.func @transform_3(%arg0: i32) -> (i32, i32) {
    %c0_i32 = arith.constant 0 : i32
    %c0_i32_0 = arith.constant 0 : i32
    return %arg0, %c0_i32 : i32, i32
  }
}

</mosaic_0001>

<llo_original>
// kernel: _forward.1
$region0: #{_forward.1}
  #allocation0 [shape = 'u32[]', space=smem, size = 0x4, offset = 0x4, fixed_abs, tag = 'smem constant byte address 0x4 - core index']
  #allocation1 [shape = 'u32[144,128]{1,0:T(1,128)}', space=vmem, size = 0x12000, scoped, tag = 'internal scratch']
  %s0 = inlined_call_operand.vmem [shape: f32[1,80], index: 0, kind: input, shape index: {}]
  %s1 = inlined_call_operand.vmem [shape: f32[80,10], index: 1, kind: input, shape index: {}]
  %s2 = inlined_call_operand.vmem [shape: f32[1,10], index: 2, kind: input, shape index: {}]
  %s3 = inlined_call_operand.hbm [shape: f32[1,10], index: 3, kind: output, shape index: {}]
  %s4 = sld [smem:[#allocation0]]
  $region22: #{_forward.1} parent=0
    _
  %s6 = ssub.s32 1, %s4
  %s7 = scalar_select 0, %s6, %s4
  $region1: #{_forward.1} parent=0
    #allocation2 [shape = 'u8[512]{0}', space=vmem, size = 0x400, scoped, tag = 'output window, operand 0, single buffered']
    #allocation3 [shape = 's32[1]{0}', space=sflag, size = 0x4, scoped, tag = 'scoped memory for _forward.1']
    %8 = vsyncpa [#allocation3], 0
    // Predicated region
    $region2: #{_forward.1} parent=1 // pred_check
      _
    $region3: #{_forward.1} parent=1 // pred_check_branch
      %10 = sbr.rel (0) target = $region5
    $region4: #{_forward.1} parent=1 // pred_region
      _
    $region5: #{_forward.1} parent=1 // pred_fallthru
      _
    // Predicated region
    $region6: #{_forward.1} parent=1 // pred_check
      _
    $region7: #{_forward.1} parent=1 // pred_check_branch
      %12 = sbr.rel (0) target = $region9
    $region8: #{_forward.1} parent=1 // pred_region
      _
    $region9: #{_forward.1} parent=1 // pred_fallthru
      _
    // Predicated region
    $region10: #{_forward.1} parent=1 // pred_check
      _
    $region11: #{_forward.1} parent=1 // pred_check_branch
      %14 = sbr.rel (0) target = $region13
    $region12: #{_forward.1} parent=1 // pred_region
      _
    $region13: #{_forward.1} parent=1 // pred_fallthru
      _
    %v15 = vld [vmem:[%s0] sm:$0x1]
    %v16 = vld [vmem:[%s1] sm:$0xff]
    %v17 = vld [vmem:[%s1 + $0x8] sm:$0xff]
    %v18 = vld [vmem:[%s1 + $0x10] sm:$0xff]
    %v19 = vld [vmem:[%s1 + $0x18] sm:$0xff]
    %v20 = vld [vmem:[%s1 + $0x20] sm:$0xff]
    %v21 = vld [vmem:[%s1 + $0x28] sm:$0xff]
    %v22 = vld [vmem:[%s1 + $0x30] sm:$0xff]
    %v23 = vld [vmem:[%s1 + $0x38] sm:$0xff]
    %v24 = vld [vmem:[%s1 + $0x40] sm:$0xff]
    %v25 = vld [vmem:[%s1 + $0x48] sm:$0xff]
    %v26 = vld [vmem:[%s2] sm:$0x1]
    %vm27 = vcmask 654336
    %v29 = vsel %vm27, %v15, 0
    %31 = vmatprep.subr.mxu0 0.0
    %32 = vmatpush1.msra.mxu0 %v16
    %33 = vmatprep.subr.mxu0 0.0
    %34 = vmatpush1.msra.mxu0 %v17
    %35 = vmatprep.subr.mxu0 0.0
    %36 = vmatpush1.msra.mxu0 %v18
    %37 = vmatprep.subr.mxu0 0.0
    %38 = vmatpush1.msra.mxu0 %v19
    %39 = vmatprep.subr.mxu0 0.0
    %40 = vmatpush1.msra.mxu0 %v20
    %41 = vmatprep.subr.mxu0 0.0
    %42 = vmatpush1.msra.mxu0 %v21
    %43 = vmatprep.subr.mxu0 0.0
    %44 = vmatpush1.msra.mxu0 %v22
    %45 = vmatprep.subr.mxu0 0.0
    %46 = vmatpush1.msra.mxu0 %v23
    %47 = vmatprep.subr.mxu0 0.0
    %48 = vmatpush1.msra.mxu0 %v24
    %49 = vmatprep.subr.mxu0 0.0
    %50 = vmatpush1.msra.mxu0 %v25
    %51 = vmatprep.subr.mxu0 0.0
    %52 = vmatpush1.msra.mxu0 0.0
    %53 = vmatprep.subr.mxu0 0.0
    %54 = vmatpush1.msra.mxu0 0.0
    %55 = vmatprep.subr.mxu0 0.0
    %56 = vmatpush1.msra.mxu0 0.0
    %57 = vmatprep.subr.mxu0 0.0
    %58 = vmatpush1.msra.mxu0 0.0
    %59 = vmatprep.subr.mxu0 0.0
    %60 = vmatpush1.msra.mxu0 0.0
    %61 = vmatprep.subr.mxu0 0.0
    %62 = vmatpush1.msra.mxu0 0.0
    %63 = vmatprep.subr.mxu0 0.0
    %64 = vmatpush1.msra.mxu0 0.0
    %65 = vmatprep.subr.mxu0 0.0
    %66 = vmatpush1.msra.mxu0 0.0
    %67 = vmatprep.subr.mxu0 0.0
    %68 = vmatpush1.msra.mxu0 0.0
    %69 = vmatprep.subr.mxu0 0.0
    %70 = vmatpush1.msra.mxu0 0.0
    %71 = vmatprep.subr.mxu0 0.0
    %72 = vmatpush1.msra.mxu0 0.0
    %73 = vmatprep.subr.mxu0 0.0
    %74 = vmatpush1.msra.mxu0 0.0
    %75 = vmatprep.subr.mxu0 0.0
    %76 = vmatpush1.msra.mxu0 0.0
    %77 = vmatprep.subr.mxu0 0.0
    %78 = vmatpush1.msra.mxu0 0.0
    %79 = vmatprep.subr.mxu0 0.0
    %80 = vmatpush1.msra.mxu0 0.0
    %81 = vmatprep.subr.mxu0 0.0
    %82 = vmatpush1.msra.mxu0 0.0
    %83 = vmatprep.subr.mxu0 0.0
    %84 = vmatpush1.msra.mxu0 0.0
    %85 = vmatprep.subr.mxu0 0.0
    %86 = vmatpush1.msra.mxu0 0.0
    %87 = vmatprep.subr.mxu0 0.0
    %88 = vmatpush1.msra.mxu0 0.0
    %89 = vmatprep.subr.mxu0 0.0
    %90 = vmatpush1.msra.mxu0 0.0
    %91 = vmatprep.subr.mxu0 0.0
    %92 = vmatpush1.msra.mxu0 0.0
    %93 = vmatprep.subr.mxu0 0.0
    %94 = vmatpush1.msra.mxu0 0.0
    %95 = vmatprep.mubr.f32.mxu0 0.0
    %96 = vmatmul.mubr.f32.gmra.mrb[0].mxu0 %v29
    %v97 = vpop.f32.mrb[0].mxu0
    %v98 = vadd.f32 %v26, %v97
    %v99 = vpop.f32.mrb[0].mxu0
    %100 = vdwg.mxu0
    %vm101 = vcmask 73728
    %102 = vst.msk [vmem:[#allocation2] sm:$0x1] %vm101, %v98
    // Predicated region
    $region14: #{_forward.1} parent=1 // pred_check
      _
    $region15: #{_forward.1} parent=1 // pred_check_branch
      %104 = sbr.rel (0) target = $region17
    $region16: #{_forward.1} parent=1 // pred_region
      %s106 = ssub.s32 16, 16
      %107 = vsyncadd [#allocation3], %s106
      %s109 = sshll.u32 [#allocation2], 4
      %s110 = int_to_ptr.vmem [resolvable:$true] %s109
      %112 = dma.vmem_to_hbm [thread:$0]  %s110, 16, %s3, [#allocation3]
    $region17: #{_forward.1} parent=1 // pred_fallthru
      _
    // Predicated region
    $region18: #{_forward.1} parent=1 // pred_check
      _
    $region19: #{_forward.1} parent=1 // pred_check_branch
      %114 = sbr.rel (0) target = $region21
    $region20: #{_forward.1} parent=1 // pred_region
      %115 = dma.done [#allocation3], 16
    $region21: #{_forward.1} parent=1 // pred_fallthru
      _
    %116 = vsyncpa [#allocation3], 1

</llo_original>
